<compile_context>
chip_gen: v7x
topology: tpu7x:2x2x1
jax: 0.10.0
libtpu: 0.0.40
codegen_flags: <defaults>
</compile_context>

<pallas_src>
import math

import jax
import jax.numpy as jnp
from jax.experimental import pallas as pl
from jax.experimental.pallas import tpu as pltpu

_BLOCK_BYTES = 3 * 1024 * 1024   # ~3 MiB per block -> 4 double-buffered blocks ~12 MiB
_VMEM_LIMIT = 16 * 1024 * 1024   # explicit scoped-VMEM cap (v5e-safe)


def _copy_kernel(x_ref, o_ref):
    # Lane-dense identity copy of one (tb, tf) tile. No relayout, no arithmetic.
    o_ref[...] = x_ref[...]


def _choose_tiles(b: int, flat: int, itemsize: int) -> tuple[int, int]:
    """Pick (tb, tf) for a mem-bound copy of a (b, flat) array.

    Prefers full-row (contiguous-DMA) blocks of ~_BLOCK_BYTES, with the
    sublane tile matched to the dtype's packing; falls back to 128-lane
    multiples for very long rows. Never produces a block whose 4 pipeline
    buffers exceed the scoped-VMEM budget.
    """
    pack = max(1, 4 // itemsize)       # sublanes packed per 32-bit: f32=1, bf16=2, i8=4
    sub = 8 * pack                     # dtype-matched sublane tile
    row_bytes = flat * itemsize

    # Whole array fits in one block: single grid step, one contiguous DMA.
    if b * row_bytes <= _BLOCK_BYTES:
        return b, flat

    # Full rows fit the budget at dtype-packed sublane granularity.
    if sub * row_bytes <= _BLOCK_BYTES:
        max_rows = _BLOCK_BYTES // row_bytes
        tb = min(b, (max_rows // sub) * sub)   # multiple of `sub` (or == b, full dim)
        return tb, flat

    # Rows are too long: tile the lane axis in multiples of 128 (unmasked vst).
    tb = sub if b >= sub else b
    tf = (max(1, _BLOCK_BYTES // (tb * itemsize)) // 128) * 128
    tf = max(tf, 128)
    if tf >= flat:
        tf = flat
    return tb, tf


def flatten_layer(x: jax.Array) -> jax.Array:
    """FlattenLayer.forward: (B, *dims) -> (B, prod(dims)).

    Flatten of contiguous trailing axes is metadata-only; per the performance
    review, the optimal implementation is the plain reshape (zero HBM traffic,
    no kernel launch). Use `flatten_layer_pallas` only when an explicitly
    materialized, independent buffer is required.
    """
    return x.reshape(x.shape[0], -1)


def flatten_layer_pallas(x: jax.Array) -> jax.Array:
    """Materializing variant: same semantics, output is an independent buffer
    produced by a tiled, lane-dense Pallas copy (also a natural fusion site if
    downstream compute is later folded into the kernel)."""
    b = x.shape[0]
    flat = math.prod(x.shape[1:])

    # Metadata-only collapse of trailing axes; all layout work is free here.
    x2 = x.reshape(b, flat)

    itemsize = jnp.dtype(x.dtype).itemsize
    tb, tf = _choose_tiles(b, flat, itemsize)
    # cdiv grid: partial edge blocks are masked automatically (OOB reads are
    # padding that only flows to dropped OOB writes — safe for an identity copy).
    grid = (pl.cdiv(b, tb), pl.cdiv(flat, tf))

    return pl.pallas_call(
        _copy_kernel,
        out_shape=jax.ShapeDtypeStruct((b, flat), x.dtype),
        grid=grid,
        in_specs=[pl.BlockSpec((tb, tf), lambda i, j: (i, j))],
        out_specs=pl.BlockSpec((tb, tf), lambda i, j: (i, j)),
        compiler_params=pltpu.CompilerParams(
            dimension_semantics=("parallel", "parallel"),
            vmem_limit_bytes=_VMEM_LIMIT,
        ),
    )(x2)


if __name__ == "__main__":
    key = jax.random.PRNGKey(0)
    # Small conv-style NCHW input consistent with the module's typical usage.
    x = jax.random.normal(key, (2, 4, 16, 16), dtype=jnp.float32)

    # Reference == torch .view(B, -1) for a contiguous row-major tensor.
    ref = x.reshape(x.shape[0], -1)

    # Primary (metadata-only) path.
    out_meta = jax.block_until_ready(flatten_layer(x))
    # Pallas copy path (run once as required).
    out_copy = jax.block_until_ready(flatten_layer_pallas(x))

    assert out_meta.shape == (2, 4 * 16 * 16), out_meta.shape
    assert out_copy.shape == (2, 4 * 16 * 16), out_copy.shape
    assert out_meta.dtype == x.dtype and out_copy.dtype == x.dtype
    assert jnp.array_equal(out_meta, ref), "metadata-path mismatch vs reference"
    assert jnp.array_equal(out_copy, ref), "pallas-path mismatch vs reference"

    print("KERNEL_OK")
</pallas_src>

<mosaic_0001>
module attributes {stable_mosaic.version = 11 : i64} {
  func.func @_copy_kernel(%arg0: i32, %arg1: i32, %arg2: memref<2x1024xf32, #tpu.memory_space<vmem>>, %arg3: memref<2x1024xf32, #tpu.memory_space<vmem>>) attributes {dimension_semantics = [#tpu.dimension_semantics<parallel>, #tpu.dimension_semantics<parallel>], iteration_bounds = array<i64: 1, 1>, scalar_prefetch = 0 : i64, scratch_operands = 0 : i64, tpu.core_type = #tpu.core_type<tc>, window_params = [{transform_indices = @transform_0, window_bounds = array<i64: 2, 1024>}, {transform_indices = @transform_1, window_bounds = array<i64: 2, 1024>}]} {
    %c0 = arith.constant 0 : index
    %c0_0 = arith.constant 0 : index
    %0 = vector.load %arg2[%c0, %c0_0] : memref<2x1024xf32, #tpu.memory_space<vmem>>, vector<2x1024xf32>
    %c0_1 = arith.constant 0 : index
    %c0_2 = arith.constant 0 : index
    %1 = vector.load %arg3[%c0_1, %c0_2] : memref<2x1024xf32, #tpu.memory_space<vmem>>, vector<2x1024xf32>
    tpu.vector_store %arg3[%c0_1, %c0_2], %0 {strides = array<i32>} : memref<2x1024xf32, #tpu.memory_space<vmem>>, vector<2x1024xf32>,
    return
  }
  func.func @transform_0(%arg0: i32, %arg1: i32) -> (i32, i32) {
    %c0_i32 = arith.constant 0 : i32
    return %arg0, %arg1 : i32, i32
  }
  func.func @transform_1(%arg0: i32, %arg1: i32) -> (i32, i32) {
    %c0_i32 = arith.constant 0 : i32
    return %arg0, %arg1 : i32, i32
  }
}

</mosaic_0001>

<llo_original>
// kernel: tpu_custom_call.1
$region0: #{tpu_custom_call.1}
  #allocation0 [shape = 'u32[]', space=smem, size = 0x4, offset = 0x4, fixed_abs, tag = 'smem constant byte address 0x4 - core index']
  #allocation1 [shape = 'u32[144,128]{1,0:T(1,128)}', space=vmem, size = 0x12000, scoped, tag = 'internal scratch']
  %s0 = inlined_call_operand.hbm [shape: f32[2,1024], index: 0, kind: input, shape index: {}]
  %s1 = inlined_call_operand.hbm [shape: f32[2,1024], index: 1, kind: output, shape index: {}]
  %s2 = sld [smem:[#allocation0]]
  $region18: #{tpu_custom_call.1} parent=0
    _
  %s4 = ssub.s32 1, %s2
  %s5 = scalar_select 0, %s4, %s2
  $region1: #{tpu_custom_call.1} parent=0
    #allocation2 [shape = 'u8[8192]{0}', space=vmem, size = 0x2000, scoped, tag = 'input window, operand 0, single buffered']
    #allocation3 [shape = 's32[1]{0}', space=sflag, size = 0x4, scoped, tag = 'scoped memory for tpu_custom_call.1']
    #allocation4 [shape = 's32[1]{0}', space=sflag, size = 0x4, scoped, tag = 'scoped memory for tpu_custom_call.1']
    #allocation5 [shape = 'u8[8192]{0}', space=vmem, size = 0x2000, scoped, tag = 'output window, operand 0, single buffered']
    %6 = vsyncpa [#allocation3], 0
    %7 = vsyncpa [#allocation4], 0
    // Predicated region
    $region2: #{tpu_custom_call.1} parent=1 // pred_check
      _
    $region3: #{tpu_custom_call.1} parent=1 // pred_check_branch
      %9 = sbr.rel (0) target = $region5
    $region4: #{tpu_custom_call.1} parent=1 // pred_region
      %s11 = ssub.s32 256, 256
      %12 = vsyncadd [#allocation3], %s11
      %s14 = sshll.u32 [#allocation2], 4
      %s15 = int_to_ptr.vmem [resolvable:$true] %s14
      %17 = dma.hbm_to_vmem [thread:$0]  %s0, 256, %s15, [#allocation3]
    $region5: #{tpu_custom_call.1} parent=1 // pred_fallthru
      _
    // Predicated region
    $region6: #{tpu_custom_call.1} parent=1 // pred_check
      _
    $region7: #{tpu_custom_call.1} parent=1 // pred_check_branch
      %19 = sbr.rel (0) target = $region9
    $region8: #{tpu_custom_call.1} parent=1 // pred_region
      %20 = dma.done [#allocation3], 256
    $region9: #{tpu_custom_call.1} parent=1 // pred_fallthru
      _
    %v21 = vld [vmem:[#allocation2] sm:$0xff]
    %v22 = vld [vmem:[#allocation2 + $0x8] sm:$0xff]
    %23 = vst [vmem:[#allocation5] sm:$0xff] %v21
    %24 = vst [vmem:[#allocation5 + $0x8] sm:$0xff] %v22
    // Predicated region
    $region10: #{tpu_custom_call.1} parent=1 // pred_check
      _
    $region11: #{tpu_custom_call.1} parent=1 // pred_check_branch
      %26 = sbr.rel (0) target = $region13
    $region12: #{tpu_custom_call.1} parent=1 // pred_region
      %s28 = ssub.s32 256, 256
      %29 = vsyncadd [#allocation4], %s28
      %s31 = sshll.u32 [#allocation5], 4
      %s32 = int_to_ptr.vmem [resolvable:$true] %s31
      %34 = dma.vmem_to_hbm [thread:$0]  %s32, 256, %s1, [#allocation4]
    $region13: #{tpu_custom_call.1} parent=1 // pred_fallthru
      _
    // Predicated region
    $region14: #{tpu_custom_call.1} parent=1 // pred_check
      _
    $region15: #{tpu_custom_call.1} parent=1 // pred_check_branch
      %36 = sbr.rel (0) target = $region17
    $region16: #{tpu_custom_call.1} parent=1 // pred_region
      %37 = dma.done [#allocation4], 256
    $region17: #{tpu_custom_call.1} parent=1 // pred_fallthru
      _
    %38 = vsyncpa [#allocation3], 1
    %39 = vsyncpa [#allocation4], 1

</llo_original>
